<compile_context>
chip_gen: v7x
topology: tpu7x:2x2x1
jax: 0.10.0
libtpu: 0.0.40
codegen_flags: <defaults>
</compile_context>

<pallas_src>
import jax
import jax.numpy as jnp
from jax.experimental import pallas as pl
from jax.experimental.pallas import tpu as pltpu

IN_FEATURES = 28 * 28          # 784
HIDDEN = 150
HIDDEN_PAD = 256               # lane-padded hidden size
NUM_CLASSES = 10
CLASSES_PAD = 128              # lane-padded class count (keep 128 for unmasked stores)
MAX_TB = 512                   # batch tile (rows) — fits comfortably in v7x 64 MiB VMEM


def _round_up(x, m):
    return ((x + m - 1) // m) * m


def _mlp_kernel(x_ref, w1_ref, b1_ref, w2_ref, b2_ref, o_ref):
    # x: (TB, 784) bf16; weights bf16; biases f32.
    x = x_ref[...]

    # ll1 + tanh  — bf16 MXU matmul, f32 accumulation; tanh in f32 on the EUP.
    h = jnp.dot(x, w1_ref[...], preferred_element_type=jnp.float32) + b1_ref[...]
    h = jnp.tanh(h)                                   # (TB, 256) f32; padded cols = tanh(0) = 0

    # ll2 — padded w2 rows are 0 so padded hidden cols contribute nothing;
    # padded b2 entries are -1e30, which masks the padded classes "for free".
    logits = jnp.dot(h.astype(jnp.bfloat16), w2_ref[...],
                     preferred_element_type=jnp.float32) + b2_ref[...]

    # numerically stable log_softmax over the class (lane) axis
    m = jnp.max(logits, axis=-1, keepdims=True)
    lse = jnp.log(jnp.sum(jnp.exp(logits - m), axis=-1, keepdims=True)) + m
    o_ref[...] = (logits - lse).astype(o_ref.dtype)


def prepare_params(w1, b1, w2, b2):
    """One-time parameter prep: pad to TPU lane widths, cast weights to bf16,
    fold the padded-class mask into b2.  Do NOT call this per forward."""
    w1_p = (jnp.zeros((IN_FEATURES, HIDDEN_PAD), jnp.bfloat16)
            .at[:, :HIDDEN].set(w1.astype(jnp.bfloat16)))
    b1_p = jnp.zeros((1, HIDDEN_PAD), jnp.float32).at[:, :HIDDEN].set(b1)
    w2_p = (jnp.zeros((HIDDEN_PAD, CLASSES_PAD), jnp.bfloat16)
            .at[:HIDDEN, :NUM_CLASSES].set(w2.astype(jnp.bfloat16)))
    b2_p = (jnp.full((1, CLASSES_PAD), -1e30, jnp.float32)
            .at[:, :NUM_CLASSES].set(b2))
    return w1_p, b1_p, w2_p, b2_p


@jax.jit
def netfull_forward(x_nchw, w1_p, b1_p, w2_p, b2_p):
    """x_nchw: (B, 1, 28, 28) float32. Returns (B, 10) log-probabilities."""
    B = x_nchw.shape[0]
    x_flat = x_nchw.reshape(B, -1).astype(jnp.bfloat16)      # (B, 784), same as torch .view

    # Batch tiling: TB rows per grid step (sublane-aligned), pad B if needed.
    TB = MAX_TB if B >= MAX_TB else _round_up(B, 8)
    B_pad = _round_up(B, TB)
    if B_pad != B:
        x_flat = jnp.pad(x_flat, ((0, B_pad - B), (0, 0)))   # zero rows -> finite, sliced off

    out_padded = pl.pallas_call(
        _mlp_kernel,
        out_shape=jax.ShapeDtypeStruct((B_pad, CLASSES_PAD), jnp.float32),
        grid=(B_pad // TB,),
        in_specs=[
            pl.BlockSpec((TB, IN_FEATURES), lambda i: (i, 0)),           # x tile (pipelined)
            pl.BlockSpec((IN_FEATURES, HIDDEN_PAD), lambda i: (0, 0)),   # w1 (resident)
            pl.BlockSpec((1, HIDDEN_PAD), lambda i: (0, 0)),             # b1 (resident)
            pl.BlockSpec((HIDDEN_PAD, CLASSES_PAD), lambda i: (0, 0)),   # w2 (resident)
            pl.BlockSpec((1, CLASSES_PAD), lambda i: (0, 0)),            # b2 (resident)
        ],
        out_specs=pl.BlockSpec((TB, CLASSES_PAD), lambda i: (i, 0)),
        compiler_params=pltpu.CompilerParams(
            dimension_semantics=("parallel",),       # true data-parallel batch axis
        ),
    )(x_flat, w1_p, b1_p, w2_p, b2_p)

    return out_padded[:B, :NUM_CLASSES]


def init_params(key):
    """Deterministic init mimicking nn.Linear default (U[-1/sqrt(fan_in), 1/sqrt(fan_in)])."""
    k1, k2, k3, k4 = jax.random.split(key, 4)
    bound1 = 1.0 / jnp.sqrt(jnp.float32(IN_FEATURES))
    bound2 = 1.0 / jnp.sqrt(jnp.float32(HIDDEN))
    w1 = jax.random.uniform(k1, (IN_FEATURES, HIDDEN), jnp.float32, -bound1, bound1)
    b1 = jax.random.uniform(k2, (HIDDEN,), jnp.float32, -bound1, bound1)
    w2 = jax.random.uniform(k3, (HIDDEN, NUM_CLASSES), jnp.float32, -bound2, bound2)
    b2 = jax.random.uniform(k4, (NUM_CLASSES,), jnp.float32, -bound2, bound2)
    return w1, b1, w2, b2


if __name__ == "__main__":
    key = jax.random.PRNGKey(0)
    k_x, k_p = jax.random.split(key)

    B = 8
    x = jax.random.normal(k_x, (B, 1, 28, 28), jnp.float32)     # NCHW, MNIST-like
    w1, b1, w2, b2 = init_params(k_p)
    w1_p, b1_p, w2_p, b2_p = prepare_params(w1, b1, w2, b2)     # one-time prep

    out = netfull_forward(x, w1_p, b1_p, w2_p, b2_p)
    out = jax.block_until_ready(out)

    # sanity: log_softmax rows sum to 1 in probability space
    row_sums = jnp.exp(out).sum(axis=-1)
    assert out.shape == (B, NUM_CLASSES)
    assert bool(jnp.all(jnp.abs(row_sums - 1.0) < 1e-3))

    # cross-check against plain-JAX f32 reference (loosened tolerance for bf16 matmuls)
    ref_h = jnp.tanh(x.reshape(B, -1) @ w1 + b1)
    ref_logits = ref_h @ w2 + b2
    ref = jax.nn.log_softmax(ref_logits, axis=-1)
    assert bool(jnp.all(jnp.abs(out - ref) < 5e-2))

    print("KERNEL_OK")
</pallas_src>

<mosaic_0001>
module attributes {stable_mosaic.version = 11 : i64} {
  func.func @_mlp_kernel(%arg0: i32, %arg1: memref<8x784xbf16, #tpu.memory_space<vmem>>, %arg2: memref<784x256xbf16, #tpu.memory_space<vmem>>, %arg3: memref<1x256xf32, #tpu.memory_space<vmem>>, %arg4: memref<256x128xbf16, #tpu.memory_space<vmem>>, %arg5: memref<1x128xf32, #tpu.memory_space<vmem>>, %arg6: memref<8x128xf32, #tpu.memory_space<vmem>>) attributes {dimension_semantics = [#tpu.dimension_semantics<parallel>], iteration_bounds = array<i64: 1>, scalar_prefetch = 0 : i64, scratch_operands = 0 : i64, tpu.core_type = #tpu.core_type<tc>, window_params = [{transform_indices = @transform_0, window_bounds = array<i64: 8, 784>}, {pipeline_mode = #tpu.pipeline_mode<synchronous>, transform_indices = @transform_1, window_bounds = array<i64: 784, 256>}, {pipeline_mode = #tpu.pipeline_mode<synchronous>, transform_indices = @transform_2, window_bounds = array<i64: 1, 256>}, {pipeline_mode = #tpu.pipeline_mode<synchronous>, transform_indices = @transform_3, window_bounds = array<i64: 256, 128>}, {pipeline_mode = #tpu.pipeline_mode<synchronous>, transform_indices = @transform_4, window_bounds = array<i64: 1, 128>}, {transform_indices = @transform_5, window_bounds = array<i64: 8, 128>}]} {
    %c0 = arith.constant 0 : index
    %c0_0 = arith.constant 0 : index
    %0 = vector.load %arg1[%c0, %c0_0] : memref<8x784xbf16, #tpu.memory_space<vmem>>, vector<8x784xbf16>
    %c0_1 = arith.constant 0 : index
    %c0_2 = arith.constant 0 : index
    %1 = vector.load %arg2[%c0_1, %c0_2] : memref<784x256xbf16, #tpu.memory_space<vmem>>, vector<784x256xbf16>
    %cst = arith.constant dense<0.000000e+00> : vector<8x256xf32>
    %2 = tpu.matmul %0, %1, %cst {dimension_numbers = #tpu.dot_dimension_numbers<[1], [0], [0], [1], [0, 0, 1, 1], [], []>} : vector<8x784xbf16>, vector<784x256xbf16>, vector<8x256xf32> -> vector<8x256xf32>
    %c0_3 = arith.constant 0 : index
    %c0_4 = arith.constant 0 : index
    %3 = vector.load %arg3[%c0_3, %c0_4] : memref<1x256xf32, #tpu.memory_space<vmem>>, vector<1x256xf32>
    %4 = vector.broadcast %3 : vector<1x256xf32> to vector<8x256xf32>
    %5 = arith.addf %2, %4 : vector<8x256xf32>
    %6 = math.tanh %5 : vector<8x256xf32>
    %7 = arith.truncf %6 : vector<8x256xf32> to vector<8x256xbf16>
    %c0_5 = arith.constant 0 : index
    %c0_6 = arith.constant 0 : index
    %8 = vector.load %arg4[%c0_5, %c0_6] : memref<256x128xbf16, #tpu.memory_space<vmem>>, vector<256x128xbf16>
    %cst_7 = arith.constant dense<0.000000e+00> : vector<8x128xf32>
    %9 = tpu.matmul %7, %8, %cst_7 {dimension_numbers = #tpu.dot_dimension_numbers<[1], [0], [0], [1], [0, 0, 1, 1], [], []>} : vector<8x256xbf16>, vector<256x128xbf16>, vector<8x128xf32> -> vector<8x128xf32>
    %c0_8 = arith.constant 0 : index
    %c0_9 = arith.constant 0 : index
    %10 = vector.load %arg5[%c0_8, %c0_9] : memref<1x128xf32, #tpu.memory_space<vmem>>, vector<1x128xf32>
    %11 = vector.broadcast %10 : vector<1x128xf32> to vector<8x128xf32>
    %12 = arith.addf %9, %11 : vector<8x128xf32>
    %cst_10 = arith.constant dense<0xFF800000> : vector<8xf32>
    %13 = vector.multi_reduction <maximumf>, %12, %cst_10 [1] : vector<8x128xf32> to vector<8xf32>
    %14 = vector.shape_cast %13 : vector<8xf32> to vector<8x1xf32>
    %15 = vector.broadcast %14 : vector<8x1xf32> to vector<8x128xf32>
    %16 = arith.subf %12, %15 : vector<8x128xf32>
    %17 = math.exp %16 : vector<8x128xf32>
    %cst_11 = arith.constant dense<0.000000e+00> : vector<8xf32>
    %18 = vector.multi_reduction <add>, %17, %cst_11 [1] : vector<8x128xf32> to vector<8xf32>
    %19 = vector.shape_cast %18 : vector<8xf32> to vector<8x1xf32>
    %20 = math.log %19 : vector<8x1xf32>
    %21 = arith.addf %20, %14 : vector<8x1xf32>
    %22 = vector.broadcast %21 : vector<8x1xf32> to vector<8x128xf32>
    %23 = arith.subf %12, %22 : vector<8x128xf32>
    %c0_12 = arith.constant 0 : index
    %c0_13 = arith.constant 0 : index
    %24 = vector.load %arg6[%c0_12, %c0_13] : memref<8x128xf32, #tpu.memory_space<vmem>>, vector<8x128xf32>
    tpu.vector_store %arg6[%c0_12, %c0_13], %23 {strides = array<i32>} : memref<8x128xf32, #tpu.memory_space<vmem>>, vector<8x128xf32>,
    return
  }
  func.func @transform_0(%arg0: i32) -> (i32, i32) {
    %c0_i32 = arith.constant 0 : i32
    %c0_i32_0 = arith.constant 0 : i32
    return %arg0, %c0_i32 : i32, i32
  }
  func.func @transform_1(%arg0: i32) -> (i32, i32) {
    %c0_i32 = arith.constant 0 : i32
    %c0_i32_0 = arith.constant 0 : i32
    %c0_i32_1 = arith.constant 0 : i32
    return %c0_i32, %c0_i32_0 : i32, i32
  }
  func.func @transform_2(%arg0: i32) -> (i32, i32) {
    %c0_i32 = arith.constant 0 : i32
    %c0_i32_0 = arith.constant 0 : i32
    %c0_i32_1 = arith.constant 0 : i32
    return %c0_i32, %c0_i32_0 : i32, i32
  }
  func.func @transform_3(%arg0: i32) -> (i32, i32) {
    %c0_i32 = arith.constant 0 : i32
    %c0_i32_0 = arith.constant 0 : i32
    %c0_i32_1 = arith.constant 0 : i32
    return %c0_i32, %c0_i32_0 : i32, i32
  }
  func.func @transform_4(%arg0: i32) -> (i32, i32) {
    %c0_i32 = arith.constant 0 : i32
    %c0_i32_0 = arith.constant 0 : i32
    %c0_i32_1 = arith.constant 0 : i32
    return %c0_i32, %c0_i32_0 : i32, i32
  }
  func.func @transform_5(%arg0: i32) -> (i32, i32) {
    %c0_i32 = arith.constant 0 : i32
    %c0_i32_0 = arith.constant 0 : i32
    return %arg0, %c0_i32 : i32, i32
  }
}

</mosaic_0001>

<llo_original>
// kernel: netfull_forward.1
$region0: #{netfull_forward.1}
  #allocation0 [shape = 'u32[]', space=smem, size = 0x4, offset = 0x4, fixed_abs, tag = 'smem constant byte address 0x4 - core index']
  #allocation1 [shape = 'u32[144,128]{1,0:T(1,128)}', space=vmem, size = 0x12000, scoped, tag = 'internal scratch']
  %s0 = inlined_call_operand.vmem [shape: bf16[8,784], index: 0, kind: input, shape index: {}]
  %s1 = inlined_call_operand.hbm [shape: bf16[784,256], index: 1, kind: input, shape index: {}]
  %s2 = inlined_call_operand.vmem [shape: f32[1,256], index: 2, kind: input, shape index: {}]
  %s3 = inlined_call_operand.vmem [shape: bf16[256,128], index: 3, kind: input, shape index: {}]
  %s4 = inlined_call_operand.vmem [shape: f32[1,128], index: 4, kind: input, shape index: {}]
  %s5 = inlined_call_operand.hbm [shape: f32[8,128], index: 5, kind: output, shape index: {}]
  %s6 = sld [smem:[#allocation0]]
  $region34: #{netfull_forward.1} parent=0
    _
  %s8 = ssub.s32 1, %s6
  %s9 = scalar_select 0, %s8, %s6
  $region1: #{netfull_forward.1} parent=0
    #allocation2 [shape = 'u8[401408]{0}', space=vmem, size = 0x62000, scoped, tag = 'input window, operand 1, single buffered']
    #allocation3 [shape = 's32[1]{0}', space=sflag, size = 0x4, scoped, tag = 'scoped memory for netfull_forward.1']
    #allocation4 [shape = 's32[1]{0}', space=sflag, size = 0x4, scoped, tag = 'scoped memory for netfull_forward.1']
    #allocation5 [shape = 'u8[4096]{0}', space=vmem, size = 0x1000, scoped, tag = 'output window, operand 0, single buffered']
    %10 = vsyncpa [#allocation3], 0
    %11 = vsyncpa [#allocation4], 0
    // Predicated region
    $region2: #{netfull_forward.1} parent=1 // pred_check
      _
    $region3: #{netfull_forward.1} parent=1 // pred_check_branch
      %13 = sbr.rel (0) target = $region5
    $region4: #{netfull_forward.1} parent=1 // pred_region
      _
    $region5: #{netfull_forward.1} parent=1 // pred_fallthru
      _
    // Predicated region
    $region6: #{netfull_forward.1} parent=1 // pred_check
      _
    $region7: #{netfull_forward.1} parent=1 // pred_check_branch
      %15 = sbr.rel (0) target = $region9
    $region8: #{netfull_forward.1} parent=1 // pred_region
      %s17 = ssub.s32 12544, 12544
      %18 = vsyncadd [#allocation3], %s17
      %s19 = sshll.u32 [#allocation2], 4
      %s20 = int_to_ptr.vmem [resolvable:$true] %s19
      %25 = dma.hbm_to_vmem [thread:$0]  %s1, 12544, %s20, [#allocation3], 128, 128, 8
    $region9: #{netfull_forward.1} parent=1 // pred_fallthru
      _
    // Predicated region
    $region10: #{netfull_forward.1} parent=1 // pred_check
      _
    $region11: #{netfull_forward.1} parent=1 // pred_check_branch
      %27 = sbr.rel (0) target = $region13
    $region12: #{netfull_forward.1} parent=1 // pred_region
      _
    $region13: #{netfull_forward.1} parent=1 // pred_fallthru
      _
    // Predicated region
    $region14: #{netfull_forward.1} parent=1 // pred_check
      _
    $region15: #{netfull_forward.1} parent=1 // pred_check_branch
      %29 = sbr.rel (0) target = $region17
    $region16: #{netfull_forward.1} parent=1 // pred_region
      _
    $region17: #{netfull_forward.1} parent=1 // pred_fallthru
      _
    // Predicated region
    $region18: #{netfull_forward.1} parent=1 // pred_check
      _
    $region19: #{netfull_forward.1} parent=1 // pred_check_branch
      %31 = sbr.rel (0) target = $region21
    $region20: #{netfull_forward.1} parent=1 // pred_region
      _
    $region21: #{netfull_forward.1} parent=1 // pred_fallthru
      _
    // Predicated region
    $region22: #{netfull_forward.1} parent=1 // pred_check
      _
    $region23: #{netfull_forward.1} parent=1 // pred_check_branch
      %33 = sbr.rel (0) target = $region25
    $region24: #{netfull_forward.1} parent=1 // pred_region
      %34 = dma.done [#allocation3], 12544
    $region25: #{netfull_forward.1} parent=1 // pred_fallthru
      _
    %v36 = vld [vmem:[%s0] sm:$0xff]
    %v37 = vld [vmem:[%s0 + $0x8] sm:$0xff]
    %v38 = vld [vmem:[%s0 + $0x10] sm:$0xff]
    %v39 = vld [vmem:[%s0 + $0x18] sm:$0xf]
    %v40 = vld [vmem:[#allocation2] sm:$0xff]
    %v41 = vld [vmem:[#allocation2 + $0x8] sm:$0xff]
    %v42 = vld [vmem:[#allocation2 + $0x10] sm:$0xff]
    %v43 = vld [vmem:[#allocation2 + $0x18] sm:$0xff]
    %v44 = vld [vmem:[#allocation2 + $0x20] sm:$0xff]
    %v45 = vld [vmem:[#allocation2 + $0x28] sm:$0xff]
    %v46 = vld [vmem:[#allocation2 + $0x30] sm:$0xff]
    %v47 = vld [vmem:[#allocation2 + $0x38] sm:$0xff]
    %v48 = vld [vmem:[#allocation2 + $0x40] sm:$0xff]
    %v49 = vld [vmem:[#allocation2 + $0x48] sm:$0xff]
    %v50 = vld [vmem:[#allocation2 + $0x50] sm:$0xff]
    %v51 = vld [vmem:[#allocation2 + $0x58] sm:$0xff]
    %v52 = vld [vmem:[#allocation2 + $0x60] sm:$0xff]
    %v53 = vld [vmem:[#allocation2 + $0x68] sm:$0xff]
    %v54 = vld [vmem:[#allocation2 + $0x70] sm:$0xff]
    %v55 = vld [vmem:[#allocation2 + $0x78] sm:$0xff]
    %v56 = vld [vmem:[#allocation2 + $0x80] sm:$0xff]
    %v57 = vld [vmem:[#allocation2 + $0x88] sm:$0xff]
    %v58 = vld [vmem:[#allocation2 + $0x90] sm:$0xff]
    %v59 = vld [vmem:[#allocation2 + $0x98] sm:$0xff]
    %v60 = vld [vmem:[#allocation2 + $0xa0] sm:$0xff]
    %v61 = vld [vmem:[#allocation2 + $0xa8] sm:$0xff]
    %v62 = vld [vmem:[#allocation2 + $0xb0] sm:$0xff]
    %v63 = vld [vmem:[#allocation2 + $0xb8] sm:$0xff]
    %v64 = vld [vmem:[#allocation2 + $0xc0] sm:$0xff]
    %v65 = vld [vmem:[#allocation2 + $0xc8] sm:$0xff]
    %v66 = vld [vmem:[#allocation2 + $0xd0] sm:$0xff]
    %v67 = vld [vmem:[#allocation2 + $0xd8] sm:$0xff]
    %v68 = vld [vmem:[#allocation2 + $0xe0] sm:$0xff]
    %v69 = vld [vmem:[#allocation2 + $0xe8] sm:$0xff]
    %v70 = vld [vmem:[#allocation2 + $0xf0] sm:$0xff]
    %v71 = vld [vmem:[#allocation2 + $0xf8] sm:$0xff]
    %v72 = vld [vmem:[#allocation2 + $0x100] sm:$0xff]
    %v73 = vld [vmem:[#allocation2 + $0x108] sm:$0xff]
    %v74 = vld [vmem:[#allocation2 + $0x110] sm:$0xff]
    %v75 = vld [vmem:[#allocation2 + $0x118] sm:$0xff]
    %v76 = vld [vmem:[#allocation2 + $0x120] sm:$0xff]
    %v77 = vld [vmem:[#allocation2 + $0x128] sm:$0xff]
    %v78 = vld [vmem:[#allocation2 + $0x130] sm:$0xff]
    %v79 = vld [vmem:[#allocation2 + $0x138] sm:$0xff]
    %v80 = vld [vmem:[#allocation2 + $0x140] sm:$0xff]
    %v81 = vld [vmem:[#allocation2 + $0x148] sm:$0xff]
    %v82 = vld [vmem:[#allocation2 + $0x150] sm:$0xff]
    %v83 = vld [vmem:[#allocation2 + $0x158] sm:$0xff]
    %v84 = vld [vmem:[#allocation2 + $0x160] sm:$0xff]
    %v85 = vld [vmem:[#allocation2 + $0x168] sm:$0xff]
    %v86 = vld [vmem:[#allocation2 + $0x170] sm:$0xff]
    %v87 = vld [vmem:[#allocation2 + $0x178] sm:$0xff]
    %v88 = vld [vmem:[#allocation2 + $0x180] sm:$0xff]
    %v89 = vld [vmem:[#allocation2 + $0x188] sm:$0xff]
    %v90 = vld [vmem:[#allocation2 + $0x190] sm:$0xff]
    %v91 = vld [vmem:[#allocation2 + $0x198] sm:$0xff]
    %v92 = vld [vmem:[#allocation2 + $0x1a0] sm:$0xff]
    %v93 = vld [vmem:[#allocation2 + $0x1a8] sm:$0xff]
    %v94 = vld [vmem:[#allocation2 + $0x1b0] sm:$0xff]
    %v95 = vld [vmem:[#allocation2 + $0x1b8] sm:$0xff]
    %v96 = vld [vmem:[#allocation2 + $0x1c0] sm:$0xff]
    %v97 = vld [vmem:[#allocation2 + $0x1c8] sm:$0xff]
    %v98 = vld [vmem:[#allocation2 + $0x1d0] sm:$0xff]
    %v99 = vld [vmem:[#allocation2 + $0x1d8] sm:$0xff]
    %v100 = vld [vmem:[#allocation2 + $0x1e0] sm:$0xff]
    %v101 = vld [vmem:[#allocation2 + $0x1e8] sm:$0xff]
    %v102 = vld [vmem:[#allocation2 + $0x1f0] sm:$0xff]
    %v103 = vld [vmem:[#allocation2 + $0x1f8] sm:$0xff]
    %v104 = vld [vmem:[#allocation2 + $0x200] sm:$0xff]
    %v105 = vld [vmem:[#allocation2 + $0x208] sm:$0xff]
    %v106 = vld [vmem:[#allocation2 + $0x210] sm:$0xff]
    %v107 = vld [vmem:[#allocation2 + $0x218] sm:$0xff]
    %v108 = vld [vmem:[#allocation2 + $0x220] sm:$0xff]
    %v109 = vld [vmem:[#allocation2 + $0x228] sm:$0xff]
    %v110 = vld [vmem:[#allocation2 + $0x230] sm:$0xff]
    %v111 = vld [vmem:[#allocation2 + $0x238] sm:$0xff]
    %v112 = vld [vmem:[#allocation2 + $0x240] sm:$0xff]
    %v113 = vld [vmem:[#allocation2 + $0x248] sm:$0xff]
    %v114 = vld [vmem:[#allocation2 + $0x250] sm:$0xff]
    %v115 = vld [vmem:[#allocation2 + $0x258] sm:$0xff]
    %v116 = vld [vmem:[#allocation2 + $0x260] sm:$0xff]
    %v117 = vld [vmem:[#allocation2 + $0x268] sm:$0xff]
    %v118 = vld [vmem:[#allocation2 + $0x270] sm:$0xff]
    %v119 = vld [vmem:[#allocation2 + $0x278] sm:$0xff]
    %v120 = vld [vmem:[#allocation2 + $0x280] sm:$0xff]
    %v121 = vld [vmem:[#allocation2 + $0x288] sm:$0xff]
    %v122 = vld [vmem:[#allocation2 + $0x290] sm:$0xff]
    %v123 = vld [vmem:[#allocation2 + $0x298] sm:$0xff]
    %v124 = vld [vmem:[#allocation2 + $0x2a0] sm:$0xff]
    %v125 = vld [vmem:[#allocation2 + $0x2a8] sm:$0xff]
    %v126 = vld [vmem:[#allocation2 + $0x2b0] sm:$0xff]
    %v127 = vld [vmem:[#allocation2 + $0x2b8] sm:$0xff]
    %v128 = vld [vmem:[#allocation2 + $0x2c0] sm:$0xff]
    %v129 = vld [vmem:[#allocation2 + $0x2c8] sm:$0xff]
    %v130 = vld [vmem:[#allocation2 + $0x2d0] sm:$0xff]
    %v131 = vld [vmem:[#allocation2 + $0x2d8] sm:$0xff]
    %v132 = vld [vmem:[#allocation2 + $0x2e0] sm:$0xff]
    %v133 = vld [vmem:[#allocation2 + $0x2e8] sm:$0xff]
    %v134 = vld [vmem:[#allocation2 + $0x2f0] sm:$0xff]
    %v135 = vld [vmem:[#allocation2 + $0x2f8] sm:$0xff]
    %v136 = vld [vmem:[#allocation2 + $0x300] sm:$0xff]
    %v137 = vld [vmem:[#allocation2 + $0x308] sm:$0xff]
    %v138 = vld [vmem:[%s2] sm:$0x3]
    %v140 = vlaneseq
    %v141 = vshrl.u32 %v140, 7
    %v142 = vsub.s32 0, %v141
    %v143 = vrot.slane %v138, %v142
    %v144 = vlaneseq
    %v145 = vshrl.u32 %v144, 7
    %v146 = vsub.s32 1, %v145
    %v147 = vrot.slane %v138, %v146
    %v154 = vunpack.c.l.b16 %v36
    %v155 = vunpack.c.h.b16 %v36
    %v156 = vunpack.c.l.b16 %v37
    %v157 = vunpack.c.h.b16 %v37
    %v158 = vunpack.c.l.b16 %v38
    %v159 = vunpack.c.h.b16 %v38
    %v160 = vunpack.c.l.b16 %v39
    %v161 = vpack.c.b16 %v154, %v154
    %v162 = vpack.c.b16 %v155, %v155
    %v163 = vpack.c.b16 %v156, %v156
    %v164 = vpack.c.b16 %v157, %v157
    %v165 = vpack.c.b16 %v158, %v158
    %v166 = vpack.c.b16 %v159, %v159
    %v167 = vpack.c.b16 %v160, %v160
    %v272 = vunpack.c.l.b16 %v40
    %v273 = vunpack.c.h.b16 %v40
    %v274 = vunpack.c.l.b16 %v41
    %v275 = vunpack.c.h.b16 %v41
    %v276 = vunpack.c.l.b16 %v42
    %v277 = vunpack.c.h.b16 %v42
    %v278 = vunpack.c.l.b16 %v43
    %v279 = vunpack.c.h.b16 %v43
    %v280 = vunpack.c.l.b16 %v44
    %v281 = vunpack.c.h.b16 %v44
    %v282 = vunpack.c.l.b16 %v45
    %v283 = vunpack.c.h.b16 %v45
    %v284 = vunpack.c.l.b16 %v46
    %v285 = vunpack.c.h.b16 %v46
    %v286 = vunpack.c.l.b16 %v47
    %v287 = vunpack.c.h.b16 %v47
    %v288 = vunpack.c.l.b16 %v48
    %v289 = vunpack.c.h.b16 %v48
    %v290 = vunpack.c.l.b16 %v49
    %v291 = vunpack.c.h.b16 %v49
    %v292 = vunpack.c.l.b16 %v50
    %v293 = vunpack.c.h.b16 %v50
    %v294 = vunpack.c.l.b16 %v51
    %v295 = vunpack.c.h.b16 %v51
    %v296 = vunpack.c.l.b16 %v52
    %v297 = vunpack.c.h.b16 %v52
    %v298 = vunpack.c.l.b16 %v53
    %v299 = vunpack.c.h.b16 %v53
    %v300 = vunpack.c.l.b16 %v54
    %v301 = vunpack.c.h.b16 %v54
    %v302 = vunpack.c.l.b16 %v55
    %v303 = vunpack.c.h.b16 %v55
    %v304 = vunpack.c.l.b16 %v56
    %v305 = vunpack.c.h.b16 %v56
    %v306 = vunpack.c.l.b16 %v57
    %v307 = vunpack.c.h.b16 %v57
    %v308 = vunpack.c.l.b16 %v58
    %v309 = vunpack.c.h.b16 %v58
    %v310 = vunpack.c.l.b16 %v59
    %v311 = vunpack.c.h.b16 %v59
    %v312 = vunpack.c.l.b16 %v60
    %v313 = vunpack.c.h.b16 %v60
    %v314 = vunpack.c.l.b16 %v61
    %v315 = vunpack.c.h.b16 %v61
    %v316 = vunpack.c.l.b16 %v62
    %v317 = vunpack.c.h.b16 %v62
    %v318 = vunpack.c.l.b16 %v63
    %v319 = vunpack.c.h.b16 %v63
    %v320 = vunpack.c.l.b16 %v64
    %v321 = vunpack.c.h.b16 %v64
    %v322 = vunpack.c.l.b16 %v65
    %v323 = vunpack.c.h.b16 %v65
    %v324 = vunpack.c.l.b16 %v66
    %v325 = vunpack.c.h.b16 %v66
    %v326 = vunpack.c.l.b16 %v67
    %v327 = vunpack.c.h.b16 %v67
    %v328 = vunpack.c.l.b16 %v68
    %v329 = vunpack.c.h.b16 %v68
    %v330 = vunpack.c.l.b16 %v69
    %v331 = vunpack.c.h.b16 %v69
    %v332 = vunpack.c.l.b16 %v70
    %v333 = vunpack.c.h.b16 %v70
    %v334 = vunpack.c.l.b16 %v71
    %v335 = vunpack.c.h.b16 %v71
    %v336 = vunpack.c.l.b16 %v72
    %v337 = vunpack.c.h.b16 %v72
    %v338 = vunpack.c.l.b16 %v73
    %v339 = vunpack.c.h.b16 %v73
    %v340 = vunpack.c.l.b16 %v74
    %v341 = vunpack.c.h.b16 %v74
    %v342 = vunpack.c.l.b16 %v75
    %v343 = vunpack.c.h.b16 %v75
    %v344 = vunpack.c.l.b16 %v76
    %v345 = vunpack.c.h.b16 %v76
    %v346 = vunpack.c.l.b16 %v77
    %v347 = vunpack.c.h.b16 %v77
    %v348 = vunpack.c.l.b16 %v78
    %v349 = vunpack.c.h.b16 %v78
    %v350 = vunpack.c.l.b16 %v79
    %v351 = vunpack.c.h.b16 %v79
    %v352 = vunpack.c.l.b16 %v80
    %v353 = vunpack.c.h.b16 %v80
    %v354 = vunpack.c.l.b16 %v81
    %v355 = vunpack.c.h.b16 %v81
    %v356 = vunpack.c.l.b16 %v82
    %v357 = vunpack.c.h.b16 %v82
    %v358 = vunpack.c.l.b16 %v83
    %v359 = vunpack.c.h.b16 %v83
    %v360 = vunpack.c.l.b16 %v84
    %v361 = vunpack.c.h.b16 %v84
    %v362 = vunpack.c.l.b16 %v85
    %v363 = vunpack.c.h.b16 %v85
    %v364 = vunpack.c.l.b16 %v86
    %v365 = vunpack.c.h.b16 %v86
    %v366 = vunpack.c.l.b16 %v87
    %v367 = vunpack.c.h.b16 %v87
    %v368 = vunpack.c.l.b16 %v88
    %v369 = vunpack.c.h.b16 %v88
    %v370 = vunpack.c.l.b16 %v89
    %v371 = vunpack.c.h.b16 %v89
    %v372 = vunpack.c.l.b16 %v90
    %v373 = vunpack.c.h.b16 %v90
    %v374 = vunpack.c.l.b16 %v91
    %v375 = vunpack.c.h.b16 %v91
    %v376 = vunpack.c.l.b16 %v92
    %v377 = vunpack.c.h.b16 %v92
    %v378 = vunpack.c.l.b16 %v93
    %v379 = vunpack.c.h.b16 %v93
    %v380 = vunpack.c.l.b16 %v94
    %v381 = vunpack.c.h.b16 %v94
    %v382 = vunpack.c.l.b16 %v95
    %v383 = vunpack.c.h.b16 %v95
    %v384 = vunpack.c.l.b16 %v96
    %v385 = vunpack.c.h.b16 %v96
    %v386 = vunpack.c.l.b16 %v97
    %v387 = vunpack.c.h.b16 %v97
    %v388 = vunpack.c.l.b16 %v98
    %v389 = vunpack.c.h.b16 %v98
    %v390 = vunpack.c.l.b16 %v99
    %v391 = vunpack.c.h.b16 %v99
    %v392 = vunpack.c.l.b16 %v100
    %v393 = vunpack.c.h.b16 %v100
    %v394 = vunpack.c.l.b16 %v101
    %v395 = vunpack.c.h.b16 %v101
    %v396 = vunpack.c.l.b16 %v102
    %v397 = vunpack.c.h.b16 %v102
    %v398 = vunpack.c.l.b16 %v103
    %v399 = vunpack.c.h.b16 %v103
    %v400 = vunpack.c.l.b16 %v104
    %v401 = vunpack.c.h.b16 %v104
    %v402 = vunpack.c.l.b16 %v105
    %v403 = vunpack.c.h.b16 %v105
    %v404 = vunpack.c.l.b16 %v106
    %v405 = vunpack.c.h.b16 %v106
    %v406 = vunpack.c.l.b16 %v107
    %v407 = vunpack.c.h.b16 %v107
    %v408 = vunpack.c.l.b16 %v108
    %v409 = vunpack.c.h.b16 %v108
    %v410 = vunpack.c.l.b16 %v109
    %v411 = vunpack.c.h.b16 %v109
    %v412 = vunpack.c.l.b16 %v110
    %v413 = vunpack.c.h.b16 %v110
    %v414 = vunpack.c.l.b16 %v111
    %v415 = vunpack.c.h.b16 %v111
    %v416 = vunpack.c.l.b16 %v112
    %v417 = vunpack.c.h.b16 %v112
    %v418 = vunpack.c.l.b16 %v113
    %v419 = vunpack.c.h.b16 %v113
    %v420 = vunpack.c.l.b16 %v114
    %v421 = vunpack.c.h.b16 %v114
    %v422 = vunpack.c.l.b16 %v115
    %v423 = vunpack.c.h.b16 %v115
    %v424 = vunpack.c.l.b16 %v116
    %v425 = vunpack.c.h.b16 %v116
    %v426 = vunpack.c.l.b16 %v117
    %v427 = vunpack.c.h.b16 %v117
    %v428 = vunpack.c.l.b16 %v118
    %v429 = vunpack.c.h.b16 %v118
    %v430 = vunpack.c.l.b16 %v119
    %v431 = vunpack.c.h.b16 %v119
    %v432 = vunpack.c.l.b16 %v120
    %v433 = vunpack.c.h.b16 %v120
    %v434 = vunpack.c.l.b16 %v121
    %v435 = vunpack.c.h.b16 %v121
    %v436 = vunpack.c.l.b16 %v122
    %v437 = vunpack.c.h.b16 %v122
    %v438 = vunpack.c.l.b16 %v123
    %v439 = vunpack.c.h.b16 %v123
    %v440 = vunpack.c.l.b16 %v124
    %v441 = vunpack.c.h.b16 %v124
    %v442 = vunpack.c.l.b16 %v125
    %v443 = vunpack.c.h.b16 %v125
    %v444 = vunpack.c.l.b16 %v126
    %v445 = vunpack.c.h.b16 %v126
    %v446 = vunpack.c.l.b16 %v127
    %v447 = vunpack.c.h.b16 %v127
    %v448 = vunpack.c.l.b16 %v128
    %v449 = vunpack.c.h.b16 %v128
    %v450 = vunpack.c.l.b16 %v129
    %v451 = vunpack.c.h.b16 %v129
    %v452 = vunpack.c.l.b16 %v130
    %v453 = vunpack.c.h.b16 %v130
    %v454 = vunpack.c.l.b16 %v131
    %v455 = vunpack.c.h.b16 %v131
    %v456 = vunpack.c.l.b16 %v132
    %v457 = vunpack.c.h.b16 %v132
    %v458 = vunpack.c.l.b16 %v133
    %v459 = vunpack.c.h.b16 %v133
    %v460 = vunpack.c.l.b16 %v134
    %v461 = vunpack.c.h.b16 %v134
    %v462 = vunpack.c.l.b16 %v135
    %v463 = vunpack.c.h.b16 %v135
    %v464 = vunpack.c.l.b16 %v136
    %v465 = vunpack.c.h.b16 %v136
    %v466 = vunpack.c.l.b16 %v137
    %v467 = vunpack.c.h.b16 %v137
    %v468 = vpack.c.b16 %v274, %v272
    %v469 = vpack.c.b16 %v275, %v273
    %v470 = vpack.c.b16 %v278, %v276
    %v471 = vpack.c.b16 %v279, %v277
    %v472 = vpack.c.b16 %v282, %v280
    %v473 = vpack.c.b16 %v283, %v281
    %v474 = vpack.c.b16 %v286, %v284
    %v475 = vpack.c.b16 %v287, %v285
    %v476 = vpack.c.b16 %v290, %v288
    %v477 = vpack.c.b16 %v291, %v289
    %v478 = vpack.c.b16 %v294, %v292
    %v479 = vpack.c.b16 %v295, %v293
    %v480 = vpack.c.b16 %v298, %v296
    %v481 = vpack.c.b16 %v299, %v297
    %v482 = vpack.c.b16 %v302, %v300
    %v483 = vpack.c.b16 %v303, %v301
    %v484 = vpack.c.b16 %v306, %v304
    %v485 = vpack.c.b16 %v307, %v305
    %v486 = vpack.c.b16 %v310, %v308
    %v487 = vpack.c.b16 %v311, %v309
    %v488 = vpack.c.b16 %v314, %v312
    %v489 = vpack.c.b16 %v315, %v313
    %v490 = vpack.c.b16 %v318, %v316
    %v491 = vpack.c.b16 %v319, %v317
    %v492 = vpack.c.b16 %v322, %v320
    %v493 = vpack.c.b16 %v323, %v321
    %v494 = vpack.c.b16 %v326, %v324
    %v495 = vpack.c.b16 %v327, %v325
    %v496 = vpack.c.b16 %v330, %v328
    %v497 = vpack.c.b16 %v331, %v329
    %v498 = vpack.c.b16 %v334, %v332
    %v499 = vpack.c.b16 %v335, %v333
    %v500 = vpack.c.b16 %v338, %v336
    %v501 = vpack.c.b16 %v339, %v337
    %v502 = vpack.c.b16 %v342, %v340
    %v503 = vpack.c.b16 %v343, %v341
    %v504 = vpack.c.b16 %v346, %v344
    %v505 = vpack.c.b16 %v347, %v345
    %v506 = vpack.c.b16 %v350, %v348
    %v507 = vpack.c.b16 %v351, %v349
    %v508 = vpack.c.b16 %v354, %v352
    %v509 = vpack.c.b16 %v355, %v353
    %v510 = vpack.c.b16 %v358, %v356
    %v511 = vpack.c.b16 %v359, %v357
    %v512 = vpack.c.b16 %v362, %v360
    %v513 = vpack.c.b16 %v363, %v361
    %v514 = vpack.c.b16 %v366, %v364
    %v515 = vpack.c.b16 %v367, %v365
    %v516 = vpack.c.b16 %v370, %v368
    %v517 = vpack.c.b16 %v371, %v369
    %v518 = vpack.c.b16 %v374, %v372
    %v519 = vpack.c.b16 %v375, %v373
    %v520 = vpack.c.b16 %v378, %v376
    %v521 = vpack.c.b16 %v379, %v377
    %v522 = vpack.c.b16 %v382, %v380
    %v523 = vpack.c.b16 %v383, %v381
    %v524 = vpack.c.b16 %v386, %v384
    %v525 = vpack.c.b16 %v387, %v385
    %v526 = vpack.c.b16 %v390, %v388
    %v527 = vpack.c.b16 %v391, %v389
    %v528 = vpack.c.b16 %v394, %v392
    %v529 = vpack.c.b16 %v395, %v393
    %v530 = vpack.c.b16 %v398, %v396
    %v531 = vpack.c.b16 %v399, %v397
    %v532 = vpack.c.b16 %v402, %v400
    %v533 = vpack.c.b16 %v403, %v401
    %v534 = vpack.c.b16 %v406, %v404
    %v535 = vpack.c.b16 %v407, %v405
    %v536 = vpack.c.b16 %v410, %v408
    %v537 = vpack.c.b16 %v411, %v409
    %v538 = vpack.c.b16 %v414, %v412
    %v539 = vpack.c.b16 %v415, %v413
    %v540 = vpack.c.b16 %v418, %v416
    %v541 = vpack.c.b16 %v419, %v417
    %v542 = vpack.c.b16 %v422, %v420
    %v543 = vpack.c.b16 %v423, %v421
    %v544 = vpack.c.b16 %v426, %v424
    %v545 = vpack.c.b16 %v427, %v425
    %v546 = vpack.c.b16 %v430, %v428
    %v547 = vpack.c.b16 %v431, %v429
    %v548 = vpack.c.b16 %v434, %v432
    %v549 = vpack.c.b16 %v435, %v433
    %v550 = vpack.c.b16 %v438, %v436
    %v551 = vpack.c.b16 %v439, %v437
    %v552 = vpack.c.b16 %v442, %v440
    %v553 = vpack.c.b16 %v443, %v441
    %v554 = vpack.c.b16 %v446, %v444
    %v555 = vpack.c.b16 %v447, %v445
    %v556 = vpack.c.b16 %v450, %v448
    %v557 = vpack.c.b16 %v451, %v449
    %v558 = vpack.c.b16 %v454, %v452
    %v559 = vpack.c.b16 %v455, %v453
    %v560 = vpack.c.b16 %v458, %v456
    %v561 = vpack.c.b16 %v459, %v457
    %v562 = vpack.c.b16 %v462, %v460
    %v563 = vpack.c.b16 %v463, %v461
    %v564 = vpack.c.b16 %v466, %v464
    %v565 = vpack.c.b16 %v467, %v465
    %vm664 = vcmask 130048
    %v666 = vsel %vm664, %v167, 0
    %668 = vmatprep.subr.bf16.mxu0 %v469
    %669 = vmatpush1.bf16.msra.mxu0 %v468
    %670 = vmatprep.subr.bf16.mxu0 %v471
    %671 = vmatpush1.bf16.msra.mxu0 %v470
    %672 = vmatprep.subr.bf16.mxu0 %v473
    %673 = vmatpush1.bf16.msra.mxu0 %v472
    %674 = vmatprep.subr.bf16.mxu0 %v475
    %675 = vmatpush1.bf16.msra.mxu0 %v474
    %676 = vmatprep.subr.bf16.mxu0 %v477
    %677 = vmatpush1.bf16.msra.mxu0 %v476
    %678 = vmatprep.subr.bf16.mxu0 %v479
    %679 = vmatpush1.bf16.msra.mxu0 %v478
    %680 = vmatprep.subr.bf16.mxu0 %v481
    %681 = vmatpush1.bf16.msra.mxu0 %v480
    %682 = vmatprep.subr.bf16.mxu0 %v483
    %683 = vmatpush1.bf16.msra.mxu0 %v482
    %684 = vmatprep.subr.bf16.mxu0 %v485
    %685 = vmatpush1.bf16.msra.mxu0 %v484
    %686 = vmatprep.subr.bf16.mxu0 %v487
    %687 = vmatpush1.bf16.msra.mxu0 %v486
    %688 = vmatprep.subr.bf16.mxu0 %v489
    %689 = vmatpush1.bf16.msra.mxu0 %v488
    %690 = vmatprep.subr.bf16.mxu0 %v491
    %691 = vmatpush1.bf16.msra.mxu0 %v490
    %692 = vmatprep.subr.bf16.mxu0 %v493
    %693 = vmatpush1.bf16.msra.mxu0 %v492
    %694 = vmatprep.subr.bf16.mxu0 %v495
    %695 = vmatpush1.bf16.msra.mxu0 %v494
    %696 = vmatprep.subr.bf16.mxu0 %v497
    %697 = vmatpush1.bf16.msra.mxu0 %v496
    %698 = vmatprep.subr.bf16.mxu0 %v499
    %699 = vmatpush1.bf16.msra.mxu0 %v498
    %700 = vmatprep.mubr.bf16.mxu0 %v162
    %701 = vmatmul.mubr.bf16.gmra.mrb[0].mxu0 %v161
    %v702 = vpop.f32.mrb[0].mxu0
    %v703 = vadd.f32 %v143, %v702
    %v704 = vpop.f32.mrb[0].mxu0
    %v705 = vadd.f32 %v147, %v704
    %v706 = vpop.f32.mrb[0].mxu0
    %v707 = vpop.f32.mrb[0].mxu0
    %708 = vdwg.mxu0
    %709 = vmatprep.subr.bf16.mxu0 %v501
    %710 = vmatpush1.bf16.msra.mxu0 %v500
    %711 = vmatprep.subr.bf16.mxu0 %v503
    %712 = vmatpush1.bf16.msra.mxu0 %v502
    %713 = vmatprep.subr.bf16.mxu0 %v505
    %714 = vmatpush1.bf16.msra.mxu0 %v504
    %715 = vmatprep.subr.bf16.mxu0 %v507
    %716 = vmatpush1.bf16.msra.mxu0 %v506
    %717 = vmatprep.subr.bf16.mxu0 %v509
    %718 = vmatpush1.bf16.msra.mxu0 %v508
    %719 = vmatprep.subr.bf16.mxu0 %v511
    %720 = vmatpush1.bf16.msra.mxu0 %v510
    %721 = vmatprep.subr.bf16.mxu0 %v513
    %722 = vmatpush1.bf16.msra.mxu0 %v512
    %723 = vmatprep.subr.bf16.mxu0 %v515
    %724 = vmatpush1.bf16.msra.mxu0 %v514
    %725 = vmatprep.subr.bf16.mxu0 %v517
    %726 = vmatpush1.bf16.msra.mxu0 %v516
    %727 = vmatprep.subr.bf16.mxu0 %v519
    %728 = vmatpush1.bf16.msra.mxu0 %v518
    %729 = vmatprep.subr.bf16.mxu0 %v521
    %730 = vmatpush1.bf16.msra.mxu0 %v520
    %731 = vmatprep.subr.bf16.mxu0 %v523
    %732 = vmatpush1.bf16.msra.mxu0 %v522
    %733 = vmatprep.subr.bf16.mxu0 %v525
    %734 = vmatpush1.bf16.msra.mxu0 %v524
    %735 = vmatprep.subr.bf16.mxu0 %v527
    %736 = vmatpush1.bf16.msra.mxu0 %v526
    %737 = vmatprep.subr.bf16.mxu0 %v529
    %738 = vmatpush1.bf16.msra.mxu0 %v528
    %739 = vmatprep.subr.bf16.mxu0 %v531
    %740 = vmatpush1.bf16.msra.mxu0 %v530
    %741 = vmatprep.mubr.bf16.mxu0 %v164
    %742 = vmatmul.mubr.bf16.gmra.mrb[0].mxu0 %v163
    %v743 = vpop.f32.mrb[0].mxu0
    %v744 = vadd.f32 %v703, %v743
    %v745 = vpop.f32.mrb[0].mxu0
    %v746 = vadd.f32 %v705, %v745
    %v747 = vpop.f32.mrb[0].mxu0
    %v748 = vpop.f32.mrb[0].mxu0
    %749 = vdwg.mxu0
    %750 = vmatprep.subr.bf16.mxu0 %v533
    %751 = vmatpush1.bf16.msra.mxu0 %v532
    %752 = vmatprep.subr.bf16.mxu0 %v535
    %753 = vmatpush1.bf16.msra.mxu0 %v534
    %754 = vmatprep.subr.bf16.mxu0 %v537
    %755 = vmatpush1.bf16.msra.mxu0 %v536
    %756 = vmatprep.subr.bf16.mxu0 %v539
    %757 = vmatpush1.bf16.msra.mxu0 %v538
    %758 = vmatprep.subr.bf16.mxu0 %v541
    %759 = vmatpush1.bf16.msra.mxu0 %v540
    %760 = vmatprep.subr.bf16.mxu0 %v543
    %761 = vmatpush1.bf16.msra.mxu0 %v542
    %762 = vmatprep.subr.bf16.mxu0 %v545
    %763 = vmatpush1.bf16.msra.mxu0 %v544
    %764 = vmatprep.subr.bf16.mxu0 %v547
    %765 = vmatpush1.bf16.msra.mxu0 %v546
    %766 = vmatprep.subr.bf16.mxu0 %v549
    %767 = vmatpush1.bf16.msra.mxu0 %v548
    %768 = vmatprep.subr.bf16.mxu0 %v551
    %769 = vmatpush1.bf16.msra.mxu0 %v550
    %770 = vmatprep.subr.bf16.mxu0 %v553
    %771 = vmatpush1.bf16.msra.mxu0 %v552
    %772 = vmatprep.subr.bf16.mxu0 %v555
    %773 = vmatpush1.bf16.msra.mxu0 %v554
    %774 = vmatprep.subr.bf16.mxu0 %v557
    %775 = vmatpush1.bf16.msra.mxu0 %v556
    %776 = vmatprep.subr.bf16.mxu0 %v559
    %777 = vmatpush1.bf16.msra.mxu0 %v558
    %778 = vmatprep.subr.bf16.mxu0 %v561
    %779 = vmatpush1.bf16.msra.mxu0 %v560
    %780 = vmatprep.subr.bf16.mxu0 %v563
    %781 = vmatpush1.bf16.msra.mxu0 %v562
    %782 = vmatprep.mubr.bf16.mxu0 %v166
    %783 = vmatmul.mubr.bf16.gmra.mrb[0].mxu0 %v165
    %v784 = vpop.f32.mrb[0].mxu0
    %v785 = vadd.f32 %v744, %v784
    %v786 = vpop.f32.mrb[0].mxu0
    %v787 = vadd.f32 %v746, %v786
    %v788 = vpop.f32.mrb[0].mxu0
    %v789 = vpop.f32.mrb[0].mxu0
    %790 = vdwg.mxu0
    %791 = vmatprep.subr.bf16.mxu0 %v565
    %792 = vmatpush1.bf16.msra.mxu0 %v564
    %793 = vmatprep.subr.bf16.mxu0 0
    %794 = vmatpush1.bf16.msra.mxu0 0
    %795 = vmatprep.subr.bf16.mxu0 0
    %796 = vmatpush1.bf16.msra.mxu0 0
    %797 = vmatprep.subr.bf16.mxu0 0
    %798 = vmatpush1.bf16.msra.mxu0 0
    %799 = vmatprep.subr.bf16.mxu0 0
    %800 = vmatpush1.bf16.msra.mxu0 0
    %801 = vmatprep.subr.bf16.mxu0 0
    %802 = vmatpush1.bf16.msra.mxu0 0
    %803 = vmatprep.subr.bf16.mxu0 0
    %804 = vmatpush1.bf16.msra.mxu0 0
    %805 = vmatprep.subr.bf16.mxu0 0
    %806 = vmatpush1.bf16.msra.mxu0 0
    %807 = vmatprep.subr.bf16.mxu0 0
    %808 = vmatpush1.bf16.msra.mxu0 0
    %809 = vmatprep.subr.bf16.mxu0 0
    %810 = vmatpush1.bf16.msra.mxu0 0
    %811 = vmatprep.subr.bf16.mxu0 0
    %812 = vmatpush1.bf16.msra.mxu0 0
    %813 = vmatprep.subr.bf16.mxu0 0
    %814 = vmatpush1.bf16.msra.mxu0 0
    %815 = vmatprep.subr.bf16.mxu0 0
    %816 = vmatpush1.bf16.msra.mxu0 0
    %817 = vmatprep.subr.bf16.mxu0 0
    %818 = vmatpush1.bf16.msra.mxu0 0
    %819 = vmatprep.subr.bf16.mxu0 0
    %820 = vmatpush1.bf16.msra.mxu0 0
    %821 = vmatprep.subr.bf16.mxu0 0
    %822 = vmatpush1.bf16.msra.mxu0 0
    %823 = vmatprep.mubr.bf16.mxu0 0
    %824 = vmatmul.mubr.bf16.gmra.mrb[0].mxu0 %v666
    %v825 = vpop.f32.mrb[0].mxu0
    %v826 = vadd.f32 %v785, %v825
    %v827 = vpop.f32.mrb[0].mxu0
    %v828 = vadd.f32 %v787, %v827
    %v829 = vpop.f32.mrb[0].mxu0
    %v830 = vpop.f32.mrb[0].mxu0
    %831 = vdwg.mxu0
    %v832 = vtanh.pop %v826
    %v833 = vtanh.pop %v828
    %v834 = vpack.c.bf16 %v832, %v832
    %v835 = vpack.c.bf16 %v833, %v833
    %v836 = vld [vmem:[%s3] sm:$0xf]
    %v837 = vld [vmem:[%s3 + $0x4] sm:$0xf]
    %v838 = vld [vmem:[%s3 + $0x8] sm:$0xf]
    %v839 = vld [vmem:[%s3 + $0xc] sm:$0xf]
    %v840 = vld [vmem:[%s3 + $0x10] sm:$0xf]
    %v841 = vld [vmem:[%s3 + $0x14] sm:$0xf]
    %v842 = vld [vmem:[%s3 + $0x18] sm:$0xf]
    %v843 = vld [vmem:[%s3 + $0x1c] sm:$0xf]
    %v844 = vld [vmem:[%s3 + $0x20] sm:$0xf]
    %v845 = vld [vmem:[%s3 + $0x24] sm:$0xf]
    %v846 = vld [vmem:[%s3 + $0x28] sm:$0xf]
    %v847 = vld [vmem:[%s3 + $0x2c] sm:$0xf]
    %v848 = vld [vmem:[%s3 + $0x30] sm:$0xf]
    %v849 = vld [vmem:[%s3 + $0x34] sm:$0xf]
    %v850 = vld [vmem:[%s3 + $0x38] sm:$0xf]
    %v851 = vld [vmem:[%s3 + $0x3c] sm:$0xf]
    %v852 = vld [vmem:[%s3 + $0x40] sm:$0xf]
    %v853 = vld [vmem:[%s3 + $0x44] sm:$0xf]
    %v854 = vld [vmem:[%s3 + $0x48] sm:$0xf]
    %v855 = vld [vmem:[%s3 + $0x4c] sm:$0xf]
    %v856 = vld [vmem:[%s3 + $0x50] sm:$0xf]
    %v857 = vld [vmem:[%s3 + $0x54] sm:$0xf]
    %v858 = vld [vmem:[%s3 + $0x58] sm:$0xf]
    %v859 = vld [vmem:[%s3 + $0x5c] sm:$0xf]
    %v860 = vld [vmem:[%s3 + $0x60] sm:$0xf]
    %v861 = vld [vmem:[%s3 + $0x64] sm:$0xf]
    %v862 = vld [vmem:[%s3 + $0x68] sm:$0xf]
    %v863 = vld [vmem:[%s3 + $0x6c] sm:$0xf]
    %v864 = vld [vmem:[%s3 + $0x70] sm:$0xf]
    %v865 = vld [vmem:[%s3 + $0x74] sm:$0xf]
    %v866 = vld [vmem:[%s3 + $0x78] sm:$0xf]
    %v867 = vld [vmem:[%s3 + $0x7c] sm:$0xf]
    %v868 = vld [vmem:[%s4] sm:$0x1]
    %v870 = vlaneseq
    %v871 = vshrl.u32 %v870, 7
    %v872 = vsub.s32 0, %v871
    %v873 = vrot.slane %v868, %v872
    %v907 = vunpack.c.l.b16 %v836
    %v908 = vunpack.c.l.b16 %v837
    %v909 = vunpack.c.l.b16 %v838
    %v910 = vunpack.c.l.b16 %v839
    %v911 = vunpack.c.l.b16 %v840
    %v912 = vunpack.c.l.b16 %v841
    %v913 = vunpack.c.l.b16 %v842
    %v914 = vunpack.c.l.b16 %v843
    %v915 = vunpack.c.l.b16 %v844
    %v916 = vunpack.c.l.b16 %v845
    %v917 = vunpack.c.l.b16 %v846
    %v918 = vunpack.c.l.b16 %v847
    %v919 = vunpack.c.l.b16 %v848
    %v920 = vunpack.c.l.b16 %v849
    %v921 = vunpack.c.l.b16 %v850
    %v922 = vunpack.c.l.b16 %v851
    %v923 = vunpack.c.l.b16 %v852
    %v924 = vunpack.c.l.b16 %v853
    %v925 = vunpack.c.l.b16 %v854
    %v926 = vunpack.c.l.b16 %v855
    %v927 = vunpack.c.l.b16 %v856
    %v928 = vunpack.c.l.b16 %v857
    %v929 = vunpack.c.l.b16 %v858
    %v930 = vunpack.c.l.b16 %v859
    %v931 = vunpack.c.l.b16 %v860
    %v932 = vunpack.c.l.b16 %v861
    %v933 = vunpack.c.l.b16 %v862
    %v934 = vunpack.c.l.b16 %v863
    %v935 = vunpack.c.l.b16 %v864
    %v936 = vunpack.c.l.b16 %v865
    %v937 = vunpack.c.l.b16 %v866
    %v938 = vunpack.c.l.b16 %v867
    %v939 = vpack.c.b16 %v908, %v907
    %v940 = vpack.c.b16 %v910, %v909
    %v941 = vpack.c.b16 %v912, %v911
    %v942 = vpack.c.b16 %v914, %v913
    %v943 = vpack.c.b16 %v916, %v915
    %v944 = vpack.c.b16 %v918, %v917
    %v945 = vpack.c.b16 %v920, %v919
    %v946 = vpack.c.b16 %v922, %v921
    %v947 = vpack.c.b16 %v924, %v923
    %v948 = vpack.c.b16 %v926, %v925
    %v949 = vpack.c.b16 %v928, %v927
    %v950 = vpack.c.b16 %v930, %v929
    %v951 = vpack.c.b16 %v932, %v931
    %v952 = vpack.c.b16 %v934, %v933
    %v953 = vpack.c.b16 %v936, %v935
    %v954 = vpack.c.b16 %v938, %v937
    %971 = vmatprep.subr.bf16.mxu0 0
    %972 = vmatpush1.bf16.msra.mxu0 %v939
    %973 = vmatprep.subr.bf16.mxu0 0
    %974 = vmatpush1.bf16.msra.mxu0 %v940
    %975 = vmatprep.subr.bf16.mxu0 0
    %976 = vmatpush1.bf16.msra.mxu0 %v941
    %977 = vmatprep.subr.bf16.mxu0 0
    %978 = vmatpush1.bf16.msra.mxu0 %v942
    %979 = vmatprep.subr.bf16.mxu0 0
    %980 = vmatpush1.bf16.msra.mxu0 %v943
    %981 = vmatprep.subr.bf16.mxu0 0
    %982 = vmatpush1.bf16.msra.mxu0 %v944
    %983 = vmatprep.subr.bf16.mxu0 0
    %984 = vmatpush1.bf16.msra.mxu0 %v945
    %985 = vmatprep.subr.bf16.mxu0 0
    %986 = vmatpush1.bf16.msra.mxu0 %v946
    %987 = vmatprep.subr.bf16.mxu0 0
    %988 = vmatpush1.bf16.msra.mxu0 %v947
    %989 = vmatprep.subr.bf16.mxu0 0
    %990 = vmatpush1.bf16.msra.mxu0 %v948
    %991 = vmatprep.subr.bf16.mxu0 0
    %992 = vmatpush1.bf16.msra.mxu0 %v949
    %993 = vmatprep.subr.bf16.mxu0 0
    %994 = vmatpush1.bf16.msra.mxu0 %v950
    %995 = vmatprep.subr.bf16.mxu0 0
    %996 = vmatpush1.bf16.msra.mxu0 %v951
    %997 = vmatprep.subr.bf16.mxu0 0
    %998 = vmatpush1.bf16.msra.mxu0 %v952
    %999 = vmatprep.subr.bf16.mxu0 0
    %1000 = vmatpush1.bf16.msra.mxu0 %v953
    %1001 = vmatprep.subr.bf16.mxu0 0
    %1002 = vmatpush1.bf16.msra.mxu0 %v954
    %1003 = vmatprep.mubr.bf16.mxu0 %v835
    %1004 = vmatmul.mubr.bf16.gmra.mrb[0].mxu0 %v834
    %v1005 = vpop.f32.mrb[0].mxu0
    %v1006 = vadd.f32 %v873, %v1005
    %v1007 = vpop.f32.mrb[0].mxu0
    %v1008 = vpop.f32.mrb[0].mxu0
    %v1009 = vpop.f32.mrb[0].mxu0
    %1010 = vdwg.mxu0
    %1011 = vmax.xlane.f32.xlu0 %v1006
    %v1012 = vpop.xlane.xlu0 %1011
    %v1013 = vsub.f32 %v1006, %v1012
    %v1014 = vmul.f32 %v1013, 1.442695
    %v1015 = vpow.pop %v1014
    %1016 = vadd.xlane.f32.xlu0 %v1015
    %v1017 = vpop.xlane.xlu0 %1016
    %v1018 = vlog2.pop %v1017
    %v1019 = vmul.f32 %v1018, 0.6931472
    %v1020 = vadd.f32 %v1019, %v1012
    %v1021 = vsub.f32 %v1006, %v1020
    %1022 = vst [vmem:[#allocation5] sm:$0xff] %v1021
    // Predicated region
    $region26: #{netfull_forward.1} parent=1 // pred_check
      _
    $region27: #{netfull_forward.1} parent=1 // pred_check_branch
      %1024 = sbr.rel (0) target = $region29
    $region28: #{netfull_forward.1} parent=1 // pred_region
      %s1026 = ssub.s32 128, 128
      %1027 = vsyncadd [#allocation4], %s1026
      %s1029 = sshll.u32 [#allocation5], 4
      %s1030 = int_to_ptr.vmem [resolvable:$true] %s1029
      %1032 = dma.vmem_to_hbm [thread:$0]  %s1030, 128, %s5, [#allocation4]
    $region29: #{netfull_forward.1} parent=1 // pred_fallthru
      _
    // Predicated region
    $region30: #{netfull_forward.1} parent=1 // pred_check
      _
    $region31: #{netfull_forward.1} parent=1 // pred_check_branch
      %1034 = sbr.rel (0) target = $region33
    $region32: #{netfull_forward.1} parent=1 // pred_region
      %1035 = dma.done [#allocation4], 128
    $region33: #{netfull_forward.1} parent=1 // pred_fallthru
      _
    %1036 = vsyncpa [#allocation3], 1
    %1037 = vsyncpa [#allocation4], 1

</llo_original>
